<compile_context>
chip_gen: v5e
topology: v5e:2x2
jax: 0.10.0
libtpu: 0.0.40
codegen_flags: <defaults>
</compile_context>

<pallas_src>
import functools

import jax
import jax.numpy as jnp
from jax import lax
from jax.experimental import pallas as pl
from jax.experimental.pallas import tpu as pltpu

GAMMA_NEG = 4.0
GAMMA_POS = 1.0
CLIP = 0.05
EPS = 1e-8

_LANE_W = 512        # lane width of the repacked slab (multiple of 128)
_ROW_ALIGN = 32      # lcm of f32 (8), bf16 (16), int8/bool (32) sublane tiles


@functools.lru_cache(maxsize=None)
def _vmem_capacity_bytes():
    """Physical VMEM per TensorCore; conservative 64 MiB (v7x) if unknown."""
    try:
        info = pltpu.get_tpu_info()
        for attr in ("vmem_capacity_bytes", "vmem_bytes", "vmem_size_bytes"):
            v = getattr(info, attr, None)
            if isinstance(v, int) and v > 0:
                return v
    except Exception:
        pass
    return 64 << 20


@functools.lru_cache(maxsize=None)
def _num_tensorcores():
    """TensorCores addressable by one pallas_call (1 on v5e/v6e, 2 on v7x)."""
    try:
        kind = jax.devices()[0].device_kind.lower()
    except Exception:
        return 1
    if "lite" in kind or "v5e" in kind or "v6e" in kind:
        return 1
    if "v7" in kind or "7x" in kind:
        return 2
    if "v4" in kind or "v5p" in kind:
        return 2          # megacore
    return 1


def _int_pow(v, n):
    """v**n for static non-negative integer n via repeated squaring (VPU only)."""
    if n == 0:
        return jnp.ones_like(v)
    result = None
    base = v
    while n > 0:
        if n & 1:
            result = base if result is None else result * base
        n >>= 1
        if n:
            base = base * base
    return result


def _asl_kernel(x_ref, y_ref, out_ref, *, gamma_neg, gamma_pos, clip, eps,
                need_mask, full_blocks, full_valid_rows, tail_cols):
    i = pl.program_id(1)

    @pl.when(i == 0)
    def _init():
        out_ref[...] = jnp.zeros_like(out_ref)

    x = x_ref[...].astype(jnp.float32)        # upcast in VMEM, inputs stay narrow in HBM
    y_raw = y_ref[...]
    if y_raw.dtype == jnp.bool_:
        is_pos = y_raw
    else:
        is_pos = y_raw > jnp.zeros((), y_raw.dtype)   # native-dtype compare, no upcast

    # sigmoid(x) = 0.5*tanh(0.5*x) + 0.5  -> exactly one EUP transcendental here
    t = jnp.tanh(0.5 * x)
    xs_pos = 0.5 * t + 0.5
    xs_neg = 0.5 - 0.5 * t
    # asymmetric clipping (probability shifting) on the negative side
    if clip is not None and clip > 0:
        xs_neg = jnp.minimum(xs_neg + clip, 1.0)

    # Binary-label select:  y*log(p+) + (1-y)*log(p-)  ==  log(selected prob)
    # -> one log per element instead of two.
    pt = jnp.where(is_pos, xs_pos, xs_neg)
    loss = jnp.log(jnp.maximum(pt, eps))

    # asymmetric focusing weight (forward-pass semantics)
    if gamma_neg > 0 or gamma_pos > 0:
        omp = 1.0 - pt
        gp, gn = float(gamma_pos), float(gamma_neg)
        if gp.is_integer() and gn.is_integer() and gp >= 0 and gn >= 0:
            # integer gammas (defaults 1 / 4): plain VPU multiplies, no EUP pow
            w = jnp.where(is_pos, _int_pow(omp, int(gp)), _int_pow(omp, int(gn)))
        else:
            # generic path (non-integer gammas); guard pow(0, 0) -> 1 like torch
            gamma = jnp.where(is_pos, gp, gn)
            pw = jnp.power(omp, gamma)
            w = jnp.where(jnp.logical_and(omp == 0.0, gamma == 0.0), 1.0, pw)
        loss = loss * w

    tile_rows, lane_w = loss.shape

    def _fold_add(v):
        # fold onto the lane-dense (8, W) accumulator: splitting the sublane dim
        # is layout-trivial and the axis-0 sum is pure VPU adds (no XLU).
        out_ref[...] += v.reshape(-1, 8, lane_w).sum(axis=0)

    if need_mask:
        g = pl.program_id(0) * pl.num_programs(1) + i   # logical (unclamped) block id

        @pl.when(g < full_blocks)
        def _plain():                                   # common case: no mask ops at all
            _fold_add(loss)

        @pl.when(g >= full_blocks)
        def _masked():                                  # only ragged / duplicated tail blocks
            row0 = g * tile_rows
            rows = row0 + lax.broadcasted_iota(jnp.int32, (tile_rows, 1), 0)
            if tail_cols:
                cols = lax.broadcasted_iota(jnp.int32, (1, lane_w), 1)
                valid = (rows < full_valid_rows) | (
                    (rows == full_valid_rows) & (cols < tail_cols))
            else:
                valid = rows < full_valid_rows
            _fold_add(jnp.where(valid, loss, 0.0))
    else:
        _fold_add(loss)


def asymmetric_loss(x, y, *, gamma_neg=GAMMA_NEG, gamma_pos=GAMMA_POS,
                    clip=CLIP, eps=EPS, block_rows=None, num_parallel=None,
                    lane_width=_LANE_W):
    """ASL forward. x: logits, y: *binarized* multi-label targets (same shape).

    x may be f32/bf16/f16 and y f32/bf16/bool/int8: both are fed to the kernel
    in their native dtypes (upcast happens in VMEM). Returns a scalar f32.
    NOTE: matches the PyTorch reference exactly only for binary y in {0, 1}.
    """
    if x.shape != y.shape:
        raise ValueError(f"x / y shape mismatch: {x.shape} vs {y.shape}")
    total = int(x.size)
    if total == 0:
        return jnp.zeros((), jnp.float32)

    C = int(x.shape[-1]) if x.ndim >= 1 else 1

    # ---- layout: present a lane-dense 2-D slab to the kernel ---------------
    if x.ndim >= 2 and C % 128 == 0 and (total // C) >= _ROW_ALIGN:
        # labels already fill whole 128-lane vregs: zero-copy view
        xv = x.reshape(-1, C)
        yv = y.reshape(-1, C)
        M, W = int(xv.shape[0]), C
    else:
        # repack: elementwise + global-sum loss is layout agnostic, so flatten
        # to (M, W) and avoid dead lanes / masked vld+vst when C % 128 != 0.
        W = max(128, (int(lane_width) // 128) * 128)
        M = max(_ROW_ALIGN, pl.cdiv(total, W))
        padded = M * W
        xf = x.reshape(-1)
        yf = y.reshape(-1)
        if padded > total:
            xf = jnp.pad(xf, (0, padded - total))
            yf = jnp.pad(yf, (0, padded - total))
        xv = xf.reshape(M, W)
        yv = yf.reshape(M, W)
    total_valid = total

    # ---- parallelism: one accumulator per real TensorCore ------------------
    P = int(num_parallel) if num_parallel else _num_tensorcores()
    P = max(1, min(P, pl.cdiv(M, _ROW_ALIGN)))      # no dead grid work on 1-TC chips
    rows_per_core = pl.cdiv(M, P)

    # ---- block sizing (per-generation) & explicit VMEM budget ---------------
    vmem_cap = _vmem_capacity_bytes()
    blk_f32_bytes = (6 << 20) if vmem_cap >= (100 << 20) else (4 << 20)
    if block_rows is None:
        block_rows = blk_f32_bytes // (W * 4)
    tile_rows = min(int(block_rows),
                    max(_ROW_ALIGN, (rows_per_core // _ROW_ALIGN) * _ROW_ALIGN))
    tile_rows = max(_ROW_ALIGN, (tile_rows // _ROW_ALIGN) * _ROW_ALIGN)

    isx = jnp.dtype(x.dtype).itemsize
    isy = jnp.dtype(y.dtype).itemsize

    def _vmem_estimate(tr):
        in_bufs = 2 * tr * W * (isx + isy)          # double-buffered input blocks
        temps = 5 * tr * W * 4                      # live f32 temporaries (generous)
        return in_bufs + temps + (8 << 20)          # + accumulator / iota / slack

    vmem_budget = (vmem_cap * 3) // 4               # never request > 75% of physical
    while tile_rows > _ROW_ALIGN and _vmem_estimate(tile_rows) > vmem_budget:
        tile_rows = max(_ROW_ALIGN, ((tile_rows // 2) // _ROW_ALIGN) * _ROW_ALIGN)
    vmem_limit = int(min(vmem_budget, max(16 << 20, _vmem_estimate(tile_rows))))

    tiles_per_core = pl.cdiv(rows_per_core, tile_rows)
    last_array_block = pl.cdiv(M, tile_rows) - 1
    block_elems = tile_rows * W
    covered = P * tiles_per_core * block_elems
    need_mask = covered > total_valid               # any ragged / duplicated block?
    full_blocks = total_valid // block_elems        # blocks that need no masking
    full_valid_rows = total_valid // W
    tail_cols = total_valid % W

    def in_map(p, i):
        g = p * tiles_per_core + i
        # fully-out-of-range blocks re-read the last valid block; they are
        # zero-masked in-kernel via the logical (unclamped) block index.
        return (jnp.minimum(g, last_array_block), 0)

    kernel = functools.partial(
        _asl_kernel, gamma_neg=gamma_neg, gamma_pos=gamma_pos, clip=clip,
        eps=eps, need_mask=need_mask, full_blocks=full_blocks,
        full_valid_rows=full_valid_rows, tail_cols=tail_cols)

    partials = pl.pallas_call(
        kernel,
        out_shape=jax.ShapeDtypeStruct((P, 8, W), jnp.float32),
        grid_spec=pltpu.PrefetchScalarGridSpec(
            num_scalar_prefetch=0,
            grid=(P, tiles_per_core),
            in_specs=[
                pl.BlockSpec((tile_rows, W), in_map),
                pl.BlockSpec((tile_rows, W), in_map),
            ],
            # per-core lane-dense (8, W) accumulator, resident across the inner axis
            out_specs=pl.BlockSpec((None, 8, W), lambda p, i: (p, 0, 0)),
        ),
        compiler_params=pltpu.CompilerParams(
            dimension_semantics=("parallel", "arbitrary"),
            vmem_limit_bytes=vmem_limit),
    )(xv, yv)

    # single tiny cross-lane / cross-core reduction + negation outside the kernel
    return -jnp.sum(partials)


def _reference(x, y, gamma_neg=GAMMA_NEG, gamma_pos=GAMMA_POS, clip=CLIP, eps=EPS):
    x = x.astype(jnp.float32)
    y = y.astype(jnp.float32)
    xs_pos = jax.nn.sigmoid(x)
    xs_neg = 1.0 - xs_pos
    if clip is not None and clip > 0:
        xs_neg = jnp.minimum(xs_neg + clip, 1.0)
    los_pos = y * jnp.log(jnp.maximum(xs_pos, eps))
    los_neg = (1.0 - y) * jnp.log(jnp.maximum(xs_neg, eps))
    loss = los_pos + los_neg
    pt = xs_pos * y + xs_neg * (1.0 - y)
    gamma = gamma_pos * y + gamma_neg * (1.0 - y)
    loss = loss * jnp.power(1.0 - pt, gamma)
    return -jnp.sum(loss)


if __name__ == "__main__":
    key = jax.random.PRNGKey(0)
    k1, k2, k3, k4, k5, k6 = jax.random.split(key, 6)

    # 1) small multi-label batch, C not a multiple of 128 -> lane-dense repack path
    N, C = 8, 12
    x = jax.random.normal(k1, (N, C), dtype=jnp.float32)
    y = (jax.random.uniform(k2, (N, C)) > 0.7).astype(jnp.float32)
    out = jax.block_until_ready(asymmetric_loss(x, y))
    ref = _reference(x, y)
    assert jnp.allclose(out, ref, rtol=1e-4, atol=1e-3), (out, ref)

    # 2) lane-aligned path with a narrow logits dtype (bf16 in HBM, f32 in VMEM)
    N2, C2 = 64, 128
    x2 = jax.random.normal(k3, (N2, C2), dtype=jnp.float32).astype(jnp.bfloat16)
    y2 = (jax.random.uniform(k4, (N2, C2)) > 0.7).astype(jnp.float32)
    out2 = jax.block_until_ready(asymmetric_loss(x2, y2))
    ref2 = _reference(x2.astype(jnp.float32), y2)
    assert jnp.allclose(out2, ref2, rtol=2e-4, atol=1e-2), (out2, ref2)

    # 3) ragged batch (exercises the gated tail-mask branch on the aligned path)
    N3, C3 = 50, 128
    x3 = jax.random.normal(k5, (N3, C3), dtype=jnp.float32)
    y3 = (jax.random.uniform(k6, (N3, C3)) > 0.7).astype(jnp.float32)
    out3 = jax.block_until_ready(asymmetric_loss(x3, y3))
    ref3 = _reference(x3, y3)
    assert jnp.allclose(out3, ref3, rtol=1e-4, atol=1e-3), (out3, ref3)

    print("KERNEL_OK")
</pallas_src>

<mosaic_0001>
module attributes {stable_mosaic.version = 11 : i64} {
  func.func @_asl_kernel(%arg0: i32, %arg1: i32, %arg2: memref<32x512xf32, #tpu.memory_space<vmem>>, %arg3: memref<32x512xf32, #tpu.memory_space<vmem>>, %arg4: memref<1x8x512xf32, #tpu.memory_space<vmem>>) attributes {dimension_semantics = [#tpu.dimension_semantics<parallel>, #tpu.dimension_semantics<arbitrary>], iteration_bounds = array<i64: 1, 1>, scalar_prefetch = 0 : i64, scratch_operands = 0 : i64, tpu.core_type = #tpu.core_type<tc>, window_params = [{transform_indices = @transform_0, window_bounds = array<i64: 32, 512>}, {transform_indices = @transform_1, window_bounds = array<i64: 32, 512>}, {transform_indices = @transform_2, window_bounds = array<i64: 1, 8, 512>}]} {
    %c0_i32 = arith.constant 0 : i32
    %0 = arith.cmpi eq, %arg1, %c0_i32 : i32
    %1 = arith.extui %0 : i1 to i32
    %c0_i32_0 = arith.constant 0 : i32
    %2 = arith.cmpi ne, %1, %c0_i32_0 : i32
    scf.if %2 {
      %cst_17 = arith.constant 0.000000e+00 : f32
      %40 = vector.broadcast %cst_17 : f32 to vector<8x512xf32>
      %c0_18 = arith.constant 0 : index
      %c0_19 = arith.constant 0 : index
      %c0_20 = arith.constant 0 : index
      %41 = vector.load %arg4[%c0_18, %c0_19, %c0_20] : memref<1x8x512xf32, #tpu.memory_space<vmem>>, vector<1x8x512xf32>
      %42 = vector.shape_cast %41 : vector<1x8x512xf32> to vector<8x512xf32>
      %43 = vector.shape_cast %40 : vector<8x512xf32> to vector<1x8x512xf32>
      tpu.vector_store %arg4[%c0_18, %c0_19, %c0_20], %43 {strides = array<i32>} : memref<1x8x512xf32, #tpu.memory_space<vmem>>, vector<1x8x512xf32>,
    } else {
    }
    %c0 = arith.constant 0 : index
    %c0_1 = arith.constant 0 : index
    %3 = vector.load %arg2[%c0, %c0_1] : memref<32x512xf32, #tpu.memory_space<vmem>>, vector<32x512xf32>
    %c0_2 = arith.constant 0 : index
    %c0_3 = arith.constant 0 : index
    %4 = vector.load %arg3[%c0_2, %c0_3] : memref<32x512xf32, #tpu.memory_space<vmem>>, vector<32x512xf32>
    %cst = arith.constant 0.000000e+00 : f32
    %5 = vector.broadcast %cst : f32 to vector<32x512xf32>
    %6 = arith.cmpf ogt, %4, %5 : vector<32x512xf32>
    %cst_4 = arith.constant 5.000000e-01 : f32
    %7 = vector.broadcast %cst_4 : f32 to vector<32x512xf32>
    %8 = arith.mulf %7, %3 : vector<32x512xf32>
    %9 = math.tanh %8 : vector<32x512xf32>
    %cst_5 = arith.constant 5.000000e-01 : f32
    %10 = vector.broadcast %cst_5 : f32 to vector<32x512xf32>
    %11 = arith.mulf %10, %9 : vector<32x512xf32>
    %cst_6 = arith.constant 5.000000e-01 : f32
    %12 = vector.broadcast %cst_6 : f32 to vector<32x512xf32>
    %13 = arith.addf %11, %12 : vector<32x512xf32>
    %cst_7 = arith.constant 5.000000e-01 : f32
    %14 = vector.broadcast %cst_7 : f32 to vector<32x512xf32>
    %15 = arith.mulf %14, %9 : vector<32x512xf32>
    %cst_8 = arith.constant 5.000000e-01 : f32
    %16 = vector.broadcast %cst_8 : f32 to vector<32x512xf32>
    %17 = arith.subf %16, %15 : vector<32x512xf32>
    %cst_9 = arith.constant 5.000000e-02 : f32
    %18 = vector.broadcast %cst_9 : f32 to vector<32x512xf32>
    %19 = arith.addf %17, %18 : vector<32x512xf32>
    %cst_10 = arith.constant 1.000000e+00 : f32
    %20 = vector.broadcast %cst_10 : f32 to vector<32x512xf32>
    %21 = arith.minimumf %19, %20 : vector<32x512xf32>
    %22 = arith.select %6, %13, %21 : vector<32x512xi1>, vector<32x512xf32>
    %cst_11 = arith.constant 9.99999993E-9 : f32
    %23 = vector.broadcast %cst_11 : f32 to vector<32x512xf32>
    %24 = arith.maximumf %22, %23 : vector<32x512xf32>
    %25 = math.log %24 : vector<32x512xf32>
    %cst_12 = arith.constant 1.000000e+00 : f32
    %26 = vector.broadcast %cst_12 : f32 to vector<32x512xf32>
    %27 = arith.subf %26, %22 : vector<32x512xf32>
    %28 = arith.mulf %27, %27 : vector<32x512xf32>
    %29 = arith.mulf %28, %28 : vector<32x512xf32>
    %30 = arith.select %6, %27, %29 : vector<32x512xi1>, vector<32x512xf32>
    %31 = arith.mulf %25, %30 : vector<32x512xf32>
    %c1_i32 = arith.constant 1 : i32
    %32 = arith.muli %arg0, %c1_i32 : i32
    %33 = arith.addi %32, %arg1 : i32
    %c0_i32_13 = arith.constant 0 : i32
    %34 = arith.cmpi slt, %33, %c0_i32_13 : i32
    %35 = arith.extui %34 : i1 to i32
    %c0_i32_14 = arith.constant 0 : i32
    %36 = arith.cmpi ne, %35, %c0_i32_14 : i32
    scf.if %36 {
      %c0_17 = arith.constant 0 : index
      %c0_18 = arith.constant 0 : index
      %c0_19 = arith.constant 0 : index
      %40 = vector.load %arg4[%c0_17, %c0_18, %c0_19] : memref<1x8x512xf32, #tpu.memory_space<vmem>>, vector<1x8x512xf32>
      %41 = vector.shape_cast %40 : vector<1x8x512xf32> to vector<8x512xf32>
      %42 = vector.shape_cast %31 : vector<32x512xf32> to vector<4x8x512xf32>
      %cst_20 = arith.constant dense<0.000000e+00> : vector<8x512xf32>
      %43 = vector.multi_reduction <add>, %42, %cst_20 [0] : vector<4x8x512xf32> to vector<8x512xf32>
      %44 = arith.addf %41, %43 : vector<8x512xf32>
      %c0_21 = arith.constant 0 : index
      %c0_22 = arith.constant 0 : index
      %c0_23 = arith.constant 0 : index
      %45 = vector.load %arg4[%c0_21, %c0_22, %c0_23] : memref<1x8x512xf32, #tpu.memory_space<vmem>>, vector<1x8x512xf32>
      %46 = vector.shape_cast %45 : vector<1x8x512xf32> to vector<8x512xf32>
      %47 = vector.shape_cast %44 : vector<8x512xf32> to vector<1x8x512xf32>
      tpu.vector_store %arg4[%c0_21, %c0_22, %c0_23], %47 {strides = array<i32>} : memref<1x8x512xf32, #tpu.memory_space<vmem>>, vector<1x8x512xf32>,
    } else {
    }
    %c0_i32_15 = arith.constant 0 : i32
    %37 = arith.cmpi sge, %33, %c0_i32_15 : i32
    %38 = arith.extui %37 : i1 to i32
    %c0_i32_16 = arith.constant 0 : i32
    %39 = arith.cmpi ne, %38, %c0_i32_16 : i32
    scf.if %39 {
      %c32_i32 = arith.constant 32 : i32
      %40 = arith.muli %33, %c32_i32 : i32
      %41 = tpu.iota {dimensions = array<i32: 0>} : vector<32x1xi32>
      %42 = vector.broadcast %40 : i32 to vector<32x1xi32>
      %43 = arith.addi %42, %41 : vector<32x1xi32>
      %44 = tpu.iota {dimensions = array<i32: 1>} : vector<1x512xi32>
      %c0_i32_17 = arith.constant 0 : i32
      %45 = vector.broadcast %c0_i32_17 : i32 to vector<32x1xi32>
      %46 = arith.cmpi slt, %43, %45 : vector<32x1xi32>
      %c0_i32_18 = arith.constant 0 : i32
      %47 = vector.broadcast %c0_i32_18 : i32 to vector<32x1xi32>
      %48 = arith.cmpi eq, %43, %47 : vector<32x1xi32>
      %c96_i32 = arith.constant 96 : i32
      %49 = vector.broadcast %c96_i32 : i32 to vector<1x512xi32>
      %50 = arith.cmpi slt, %44, %49 : vector<1x512xi32>
      %51 = vector.broadcast %48 : vector<32x1xi1> to vector<32x512xi1>
      %52 = vector.broadcast %50 : vector<1x512xi1> to vector<32x512xi1>
      %53 = arith.andi %51, %52 : vector<32x512xi1>
      %54 = vector.broadcast %46 : vector<32x1xi1> to vector<32x512xi1>
      %55 = arith.ori %54, %53 : vector<32x512xi1>
      %cst_19 = arith.constant 0.000000e+00 : f32
      %56 = vector.broadcast %cst_19 : f32 to vector<32x512xf32>
      %57 = arith.select %55, %31, %56 : vector<32x512xi1>, vector<32x512xf32>
      %c0_20 = arith.constant 0 : index
      %c0_21 = arith.constant 0 : index
      %c0_22 = arith.constant 0 : index
      %58 = vector.load %arg4[%c0_20, %c0_21, %c0_22] : memref<1x8x512xf32, #tpu.memory_space<vmem>>, vector<1x8x512xf32>
      %59 = vector.shape_cast %58 : vector<1x8x512xf32> to vector<8x512xf32>
      %60 = vector.shape_cast %57 : vector<32x512xf32> to vector<4x8x512xf32>
      %cst_23 = arith.constant dense<0.000000e+00> : vector<8x512xf32>
      %61 = vector.multi_reduction <add>, %60, %cst_23 [0] : vector<4x8x512xf32> to vector<8x512xf32>
      %62 = arith.addf %59, %61 : vector<8x512xf32>
      %c0_24 = arith.constant 0 : index
      %c0_25 = arith.constant 0 : index
      %c0_26 = arith.constant 0 : index
      %63 = vector.load %arg4[%c0_24, %c0_25, %c0_26] : memref<1x8x512xf32, #tpu.memory_space<vmem>>, vector<1x8x512xf32>
      %64 = vector.shape_cast %63 : vector<1x8x512xf32> to vector<8x512xf32>
      %65 = vector.shape_cast %62 : vector<8x512xf32> to vector<1x8x512xf32>
      tpu.vector_store %arg4[%c0_24, %c0_25, %c0_26], %65 {strides = array<i32>} : memref<1x8x512xf32, #tpu.memory_space<vmem>>, vector<1x8x512xf32>,
    } else {
    }
    return
  }
  func.func @transform_0(%arg0: i32, %arg1: i32) -> (i32, i32) {
    %c1_i32 = arith.constant 1 : i32
    %0 = arith.muli %arg0, %c1_i32 : i32
    %1 = arith.addi %0, %arg1 : i32
    %c0_i32 = arith.constant 0 : i32
    %2 = arith.minsi %1, %c0_i32 : i32
    %c0_i32_0 = arith.constant 0 : i32
    %c0_i32_1 = arith.constant 0 : i32
    return %2, %c0_i32_0 : i32, i32
  }
  func.func @transform_1(%arg0: i32, %arg1: i32) -> (i32, i32) {
    %c1_i32 = arith.constant 1 : i32
    %0 = arith.muli %arg0, %c1_i32 : i32
    %1 = arith.addi %0, %arg1 : i32
    %c0_i32 = arith.constant 0 : i32
    %2 = arith.minsi %1, %c0_i32 : i32
    %c0_i32_0 = arith.constant 0 : i32
    %c0_i32_1 = arith.constant 0 : i32
    return %2, %c0_i32_0 : i32, i32
  }
  func.func @transform_2(%arg0: i32, %arg1: i32) -> (i32, i32, i32) {
    %c0_i32 = arith.constant 0 : i32
    %c0_i32_0 = arith.constant 0 : i32
    %c0_i32_1 = arith.constant 0 : i32
    return %arg0, %c0_i32, %c0_i32_0 : i32, i32, i32
  }
}

</mosaic_0001>

<llo_original>
// kernel: tpu_custom_call.1
$region0: #{tpu_custom_call.1}
  #allocation0 [shape = 'u32[]', space=smem, size = 0x4, offset = 0x4, fixed_abs, tag = 'smem constant byte address 0x4 - core index']
  #allocation1 [shape = 'u32[72,128]{1,0:T(1,128)}', space=vmem, size = 0x9000, scoped, tag = 'internal scratch']
  %s0 = inlined_call_operand.hbm [shape: f32[32,512], index: 0, kind: input, shape index: {}]
  %s1 = inlined_call_operand.hbm [shape: f32[32,512], index: 1, kind: input, shape index: {}]
  %s2 = inlined_call_operand.hbm [shape: f32[1,8,512], index: 2, kind: output, shape index: {}]
  %s3 = sld [smem:[#allocation0]]
  $region38: #{tpu_custom_call.1} parent=0
    _
  %s5 = ssub.s32 1, %s3
  %s6 = scalar_select 0, %s5, %s3
  $region1: #{tpu_custom_call.1} parent=0
    #allocation2 [shape = 'u8[65536]{0}', space=vmem, size = 0x10000, scoped, tag = 'input window, operand 0, single buffered']
    #allocation3 [shape = 's32[1]{0}', space=sflag, size = 0x4, scoped, tag = 'scoped memory for tpu_custom_call.1']
    #allocation4 [shape = 's32[1]{0}', space=sflag, size = 0x4, scoped, tag = 'scoped memory for tpu_custom_call.1']
    #allocation5 [shape = 'u8[65536]{0}', space=vmem, size = 0x10000, scoped, tag = 'input window, operand 1, single buffered']
    #allocation6 [shape = 's32[1]{0}', space=sflag, size = 0x4, scoped, tag = 'scoped memory for tpu_custom_call.1']
    #allocation7 [shape = 'u8[16384]{0}', space=vmem, size = 0x4000, scoped, tag = 'output window, operand 0, single buffered']
    %7 = vsyncpa [#allocation3], 0
    %8 = vsyncpa [#allocation6], 0
    %9 = vsyncpa [#allocation4], 0
    // Predicated region
    $region2: #{tpu_custom_call.1} parent=1 // pred_check
      _
    $region3: #{tpu_custom_call.1} parent=1 // pred_check_branch
      %11 = sbr.rel (0) target = $region5
    $region4: #{tpu_custom_call.1} parent=1 // pred_region
      %s12 = sadd.s32 0, 0
      %p13 = scmp.lt.s32.totalorder %s12, 0
      %s14 = scalar_select %p13, %s12, 0
      %s15 = smul.u32 4, %s14
      %17 = vsyncadd [#allocation3], 0
      %s18 = smul.addr %s15, 4
      %s19 = smul.addr %s18, 8
      %s20 = scalar_lea.hbm %s0, %s19
      %s21 = sshll.u32 %s20, 4
      %s22 = int_to_ptr.hbm [resolvable:$true] %s21
      %s23 = sshll.u32 [#allocation2], 4
      %s24 = int_to_ptr.vmem [resolvable:$true] %s23
      %29 = dma.hbm_to_vmem [thread:$0]  %s22, 2048, %s24, [#allocation3], 512, 512, 32
    $region5: #{tpu_custom_call.1} parent=1 // pred_fallthru
      _
    // Predicated region
    $region6: #{tpu_custom_call.1} parent=1 // pred_check
      _
    $region7: #{tpu_custom_call.1} parent=1 // pred_check_branch
      %31 = sbr.rel (0) target = $region9
    $region8: #{tpu_custom_call.1} parent=1 // pred_region
      %s32 = sadd.s32 0, 0
      %p33 = scmp.lt.s32.totalorder %s32, 0
      %s34 = scalar_select %p33, %s32, 0
      %s35 = smul.u32 4, %s34
      %37 = vsyncadd [#allocation6], 0
      %s38 = smul.addr %s35, 4
      %s39 = smul.addr %s38, 8
      %s40 = scalar_lea.hbm %s1, %s39
      %s41 = sshll.u32 %s40, 4
      %s42 = int_to_ptr.hbm [resolvable:$true] %s41
      %s43 = sshll.u32 [#allocation5], 4
      %s44 = int_to_ptr.vmem [resolvable:$true] %s43
      %49 = dma.hbm_to_vmem [thread:$0]  %s42, 2048, %s44, [#allocation6], 512, 512, 32
    $region9: #{tpu_custom_call.1} parent=1 // pred_fallthru
      _
    // Predicated region
    $region10: #{tpu_custom_call.1} parent=1 // pred_check
      _
    $region11: #{tpu_custom_call.1} parent=1 // pred_check_branch
      %51 = sbr.rel (0) target = $region13
    $region12: #{tpu_custom_call.1} parent=1 // pred_region
      %53 = dma.done [#allocation3], 2048
    $region13: #{tpu_custom_call.1} parent=1 // pred_fallthru
      _
    // Predicated region
    $region14: #{tpu_custom_call.1} parent=1 // pred_check
      _
    $region15: #{tpu_custom_call.1} parent=1 // pred_check_branch
      %55 = sbr.rel (0) target = $region17
    $region16: #{tpu_custom_call.1} parent=1 // pred_region
      %57 = dma.done [#allocation6], 2048
    $region17: #{tpu_custom_call.1} parent=1 // pred_fallthru
      _
    %s58 = sadd.s32 0, 0
    %p59 = scmp.lt.s32.totalorder %s58, 0
    %s60 = scalar_select %p59, %s58, 0
    %s61 = smul.u32 4, %s60
    %s62 = sadd.s32 0, 0
    %p63 = scmp.lt.s32.totalorder %s62, 0
    %s64 = scalar_select %p63, %s62, 0
    %s65 = smul.u32 4, %s64
    %p66 = scmp.eq.s32.totalorder 0, 0
    // Predicated region
    $region18: #{tpu_custom_call.1} parent=1 // pred_check
      %p67 = pneg %p66
    $region19: #{tpu_custom_call.1} parent=1 // pred_check_branch
      %69 = sbr.rel (%p67) target = $region21
    $region20: #{tpu_custom_call.1} parent=1 // pred_region
      %70 = vst [vmem:[#allocation7] sm:$0xff] 0.0
      %71 = vst [vmem:[#allocation7 + $0x8] sm:$0xff] 0.0
      %72 = vst [vmem:[#allocation7 + $0x10] sm:$0xff] 0.0
      %73 = vst [vmem:[#allocation7 + $0x18] sm:$0xff] 0.0
    $region21: #{tpu_custom_call.1} parent=1 // pred_fallthru
      _
    %v74 = vld [vmem:[#allocation2] sm:$0xff]
    %v75 = vld [vmem:[#allocation2 + $0x8] sm:$0xff]
    %v76 = vld [vmem:[#allocation2 + $0x10] sm:$0xff]
    %v77 = vld [vmem:[#allocation2 + $0x18] sm:$0xff]
    %v78 = vld [vmem:[#allocation2 + $0x20] sm:$0xff]
    %v79 = vld [vmem:[#allocation2 + $0x28] sm:$0xff]
    %v80 = vld [vmem:[#allocation2 + $0x30] sm:$0xff]
    %v81 = vld [vmem:[#allocation2 + $0x38] sm:$0xff]
    %v82 = vld [vmem:[#allocation2 + $0x40] sm:$0xff]
    %v83 = vld [vmem:[#allocation2 + $0x48] sm:$0xff]
    %v84 = vld [vmem:[#allocation2 + $0x50] sm:$0xff]
    %v85 = vld [vmem:[#allocation2 + $0x58] sm:$0xff]
    %v86 = vld [vmem:[#allocation2 + $0x60] sm:$0xff]
    %v87 = vld [vmem:[#allocation2 + $0x68] sm:$0xff]
    %v88 = vld [vmem:[#allocation2 + $0x70] sm:$0xff]
    %v89 = vld [vmem:[#allocation2 + $0x78] sm:$0xff]
    %v90 = vld [vmem:[#allocation5] sm:$0xff]
    %v91 = vld [vmem:[#allocation5 + $0x8] sm:$0xff]
    %v92 = vld [vmem:[#allocation5 + $0x10] sm:$0xff]
    %v93 = vld [vmem:[#allocation5 + $0x18] sm:$0xff]
    %v94 = vld [vmem:[#allocation5 + $0x20] sm:$0xff]
    %v95 = vld [vmem:[#allocation5 + $0x28] sm:$0xff]
    %v96 = vld [vmem:[#allocation5 + $0x30] sm:$0xff]
    %v97 = vld [vmem:[#allocation5 + $0x38] sm:$0xff]
    %v98 = vld [vmem:[#allocation5 + $0x40] sm:$0xff]
    %v99 = vld [vmem:[#allocation5 + $0x48] sm:$0xff]
    %v100 = vld [vmem:[#allocation5 + $0x50] sm:$0xff]
    %v101 = vld [vmem:[#allocation5 + $0x58] sm:$0xff]
    %v102 = vld [vmem:[#allocation5 + $0x60] sm:$0xff]
    %v103 = vld [vmem:[#allocation5 + $0x68] sm:$0xff]
    %v104 = vld [vmem:[#allocation5 + $0x70] sm:$0xff]
    %v105 = vld [vmem:[#allocation5 + $0x78] sm:$0xff]
    %vm106 = vcmp.gt.f32.partialorder %v90, 0.0
    %vm107 = vcmp.gt.f32.partialorder %v91, 0.0
    %vm108 = vcmp.gt.f32.partialorder %v92, 0.0
    %vm109 = vcmp.gt.f32.partialorder %v93, 0.0
    %vm110 = vcmp.gt.f32.partialorder %v94, 0.0
    %vm111 = vcmp.gt.f32.partialorder %v95, 0.0
    %vm112 = vcmp.gt.f32.partialorder %v96, 0.0
    %vm113 = vcmp.gt.f32.partialorder %v97, 0.0
    %vm114 = vcmp.gt.f32.partialorder %v98, 0.0
    %vm115 = vcmp.gt.f32.partialorder %v99, 0.0
    %vm116 = vcmp.gt.f32.partialorder %v100, 0.0
    %vm117 = vcmp.gt.f32.partialorder %v101, 0.0
    %vm118 = vcmp.gt.f32.partialorder %v102, 0.0
    %vm119 = vcmp.gt.f32.partialorder %v103, 0.0
    %vm120 = vcmp.gt.f32.partialorder %v104, 0.0
    %vm121 = vcmp.gt.f32.partialorder %v105, 0.0
    %v122 = vmul.f32 %v74, 0.5
    %v123 = vmul.f32 %v75, 0.5
    %v124 = vmul.f32 %v76, 0.5
    %v125 = vmul.f32 %v77, 0.5
    %v126 = vmul.f32 %v78, 0.5
    %v127 = vmul.f32 %v79, 0.5
    %v128 = vmul.f32 %v80, 0.5
    %v129 = vmul.f32 %v81, 0.5
    %v130 = vmul.f32 %v82, 0.5
    %v131 = vmul.f32 %v83, 0.5
    %v132 = vmul.f32 %v84, 0.5
    %v133 = vmul.f32 %v85, 0.5
    %v134 = vmul.f32 %v86, 0.5
    %v135 = vmul.f32 %v87, 0.5
    %v136 = vmul.f32 %v88, 0.5
    %v137 = vmul.f32 %v89, 0.5
    %v138 = vtanh.pop %v122
    %v139 = vtanh.pop %v123
    %v140 = vtanh.pop %v124
    %v141 = vtanh.pop %v125
    %v142 = vtanh.pop %v126
    %v143 = vtanh.pop %v127
    %v144 = vtanh.pop %v128
    %v145 = vtanh.pop %v129
    %v146 = vtanh.pop %v130
    %v147 = vtanh.pop %v131
    %v148 = vtanh.pop %v132
    %v149 = vtanh.pop %v133
    %v150 = vtanh.pop %v134
    %v151 = vtanh.pop %v135
    %v152 = vtanh.pop %v136
    %v153 = vtanh.pop %v137
    %v154 = vmul.f32 %v138, 0.5
    %v155 = vmul.f32 %v139, 0.5
    %v156 = vmul.f32 %v140, 0.5
    %v157 = vmul.f32 %v141, 0.5
    %v158 = vmul.f32 %v142, 0.5
    %v159 = vmul.f32 %v143, 0.5
    %v160 = vmul.f32 %v144, 0.5
    %v161 = vmul.f32 %v145, 0.5
    %v162 = vmul.f32 %v146, 0.5
    %v163 = vmul.f32 %v147, 0.5
    %v164 = vmul.f32 %v148, 0.5
    %v165 = vmul.f32 %v149, 0.5
    %v166 = vmul.f32 %v150, 0.5
    %v167 = vmul.f32 %v151, 0.5
    %v168 = vmul.f32 %v152, 0.5
    %v169 = vmul.f32 %v153, 0.5
    %v170 = vadd.f32 %v154, 0.5
    %v171 = vadd.f32 %v155, 0.5
    %v172 = vadd.f32 %v156, 0.5
    %v173 = vadd.f32 %v157, 0.5
    %v174 = vadd.f32 %v158, 0.5
    %v175 = vadd.f32 %v159, 0.5
    %v176 = vadd.f32 %v160, 0.5
    %v177 = vadd.f32 %v161, 0.5
    %v178 = vadd.f32 %v162, 0.5
    %v179 = vadd.f32 %v163, 0.5
    %v180 = vadd.f32 %v164, 0.5
    %v181 = vadd.f32 %v165, 0.5
    %v182 = vadd.f32 %v166, 0.5
    %v183 = vadd.f32 %v167, 0.5
    %v184 = vadd.f32 %v168, 0.5
    %v185 = vadd.f32 %v169, 0.5
    %v186 = vsub.f32 0.5, %v154
    %v187 = vsub.f32 0.5, %v155
    %v188 = vsub.f32 0.5, %v156
    %v189 = vsub.f32 0.5, %v157
    %v190 = vsub.f32 0.5, %v158
    %v191 = vsub.f32 0.5, %v159
    %v192 = vsub.f32 0.5, %v160
    %v193 = vsub.f32 0.5, %v161
    %v194 = vsub.f32 0.5, %v162
    %v195 = vsub.f32 0.5, %v163
    %v196 = vsub.f32 0.5, %v164
    %v197 = vsub.f32 0.5, %v165
    %v198 = vsub.f32 0.5, %v166
    %v199 = vsub.f32 0.5, %v167
    %v200 = vsub.f32 0.5, %v168
    %v201 = vsub.f32 0.5, %v169
    %v202 = vadd.f32 %v186, 0.05
    %v203 = vadd.f32 %v187, 0.05
    %v204 = vadd.f32 %v188, 0.05
    %v205 = vadd.f32 %v189, 0.05
    %v206 = vadd.f32 %v190, 0.05
    %v207 = vadd.f32 %v191, 0.05
    %v208 = vadd.f32 %v192, 0.05
    %v209 = vadd.f32 %v193, 0.05
    %v210 = vadd.f32 %v194, 0.05
    %v211 = vadd.f32 %v195, 0.05
    %v212 = vadd.f32 %v196, 0.05
    %v213 = vadd.f32 %v197, 0.05
    %v214 = vadd.f32 %v198, 0.05
    %v215 = vadd.f32 %v199, 0.05
    %v216 = vadd.f32 %v200, 0.05
    %v217 = vadd.f32 %v201, 0.05
    %v218 = vmin.f32 %v202, 1.0
    %v219 = vmin.f32 %v203, 1.0
    %v220 = vmin.f32 %v204, 1.0
    %v221 = vmin.f32 %v205, 1.0
    %v222 = vmin.f32 %v206, 1.0
    %v223 = vmin.f32 %v207, 1.0
    %v224 = vmin.f32 %v208, 1.0
    %v225 = vmin.f32 %v209, 1.0
    %v226 = vmin.f32 %v210, 1.0
    %v227 = vmin.f32 %v211, 1.0
    %v228 = vmin.f32 %v212, 1.0
    %v229 = vmin.f32 %v213, 1.0
    %v230 = vmin.f32 %v214, 1.0
    %v231 = vmin.f32 %v215, 1.0
    %v232 = vmin.f32 %v216, 1.0
    %v233 = vmin.f32 %v217, 1.0
    %v234 = vsel %vm106, %v170, %v218
    %v235 = vsel %vm107, %v171, %v219
    %v236 = vsel %vm108, %v172, %v220
    %v237 = vsel %vm109, %v173, %v221
    %v238 = vsel %vm110, %v174, %v222
    %v239 = vsel %vm111, %v175, %v223
    %v240 = vsel %vm112, %v176, %v224
    %v241 = vsel %vm113, %v177, %v225
    %v242 = vsel %vm114, %v178, %v226
    %v243 = vsel %vm115, %v179, %v227
    %v244 = vsel %vm116, %v180, %v228
    %v245 = vsel %vm117, %v181, %v229
    %v246 = vsel %vm118, %v182, %v230
    %v247 = vsel %vm119, %v183, %v231
    %v248 = vsel %vm120, %v184, %v232
    %v249 = vsel %vm121, %v185, %v233
    %v250 = vmax.f32 %v234, 1e-08
    %v251 = vmax.f32 %v235, 1e-08
    %v252 = vmax.f32 %v236, 1e-08
    %v253 = vmax.f32 %v237, 1e-08
    %v254 = vmax.f32 %v238, 1e-08
    %v255 = vmax.f32 %v239, 1e-08
    %v256 = vmax.f32 %v240, 1e-08
    %v257 = vmax.f32 %v241, 1e-08
    %v258 = vmax.f32 %v242, 1e-08
    %v259 = vmax.f32 %v243, 1e-08
    %v260 = vmax.f32 %v244, 1e-08
    %v261 = vmax.f32 %v245, 1e-08
    %v262 = vmax.f32 %v246, 1e-08
    %v263 = vmax.f32 %v247, 1e-08
    %v264 = vmax.f32 %v248, 1e-08
    %v265 = vmax.f32 %v249, 1e-08
    %v266 = vlog2.pop %v250
    %v267 = vmul.f32 %v266, 0.6931472
    %v268 = vlog2.pop %v251
    %v269 = vmul.f32 %v268, 0.6931472
    %v270 = vlog2.pop %v252
    %v271 = vmul.f32 %v270, 0.6931472
    %v272 = vlog2.pop %v253
    %v273 = vmul.f32 %v272, 0.6931472
    %v274 = vlog2.pop %v254
    %v275 = vmul.f32 %v274, 0.6931472
    %v276 = vlog2.pop %v255
    %v277 = vmul.f32 %v276, 0.6931472
    %v278 = vlog2.pop %v256
    %v279 = vmul.f32 %v278, 0.6931472
    %v280 = vlog2.pop %v257
    %v281 = vmul.f32 %v280, 0.6931472
    %v282 = vlog2.pop %v258
    %v283 = vmul.f32 %v282, 0.6931472
    %v284 = vlog2.pop %v259
    %v285 = vmul.f32 %v284, 0.6931472
    %v286 = vlog2.pop %v260
    %v287 = vmul.f32 %v286, 0.6931472
    %v288 = vlog2.pop %v261
    %v289 = vmul.f32 %v288, 0.6931472
    %v290 = vlog2.pop %v262
    %v291 = vmul.f32 %v290, 0.6931472
    %v292 = vlog2.pop %v263
    %v293 = vmul.f32 %v292, 0.6931472
    %v294 = vlog2.pop %v264
    %v295 = vmul.f32 %v294, 0.6931472
    %v296 = vlog2.pop %v265
    %v297 = vmul.f32 %v296, 0.6931472
    %v298 = vsub.f32 1.0, %v234
    %v299 = vsub.f32 1.0, %v235
    %v300 = vsub.f32 1.0, %v236
    %v301 = vsub.f32 1.0, %v237
    %v302 = vsub.f32 1.0, %v238
    %v303 = vsub.f32 1.0, %v239
    %v304 = vsub.f32 1.0, %v240
    %v305 = vsub.f32 1.0, %v241
    %v306 = vsub.f32 1.0, %v242
    %v307 = vsub.f32 1.0, %v243
    %v308 = vsub.f32 1.0, %v244
    %v309 = vsub.f32 1.0, %v245
    %v310 = vsub.f32 1.0, %v246
    %v311 = vsub.f32 1.0, %v247
    %v312 = vsub.f32 1.0, %v248
    %v313 = vsub.f32 1.0, %v249
    %v314 = vmul.f32 %v298, %v298
    %v315 = vmul.f32 %v299, %v299
    %v316 = vmul.f32 %v300, %v300
    %v317 = vmul.f32 %v301, %v301
    %v318 = vmul.f32 %v302, %v302
    %v319 = vmul.f32 %v303, %v303
    %v320 = vmul.f32 %v304, %v304
    %v321 = vmul.f32 %v305, %v305
    %v322 = vmul.f32 %v306, %v306
    %v323 = vmul.f32 %v307, %v307
    %v324 = vmul.f32 %v308, %v308
    %v325 = vmul.f32 %v309, %v309
    %v326 = vmul.f32 %v310, %v310
    %v327 = vmul.f32 %v311, %v311
    %v328 = vmul.f32 %v312, %v312
    %v329 = vmul.f32 %v313, %v313
    %v330 = vmul.f32 %v314, %v314
    %v331 = vmul.f32 %v315, %v315
    %v332 = vmul.f32 %v316, %v316
    %v333 = vmul.f32 %v317, %v317
    %v334 = vmul.f32 %v318, %v318
    %v335 = vmul.f32 %v319, %v319
    %v336 = vmul.f32 %v320, %v320
    %v337 = vmul.f32 %v321, %v321
    %v338 = vmul.f32 %v322, %v322
    %v339 = vmul.f32 %v323, %v323
    %v340 = vmul.f32 %v324, %v324
    %v341 = vmul.f32 %v325, %v325
    %v342 = vmul.f32 %v326, %v326
    %v343 = vmul.f32 %v327, %v327
    %v344 = vmul.f32 %v328, %v328
    %v345 = vmul.f32 %v329, %v329
    %v346 = vsel %vm106, %v298, %v330
    %v347 = vsel %vm107, %v299, %v331
    %v348 = vsel %vm108, %v300, %v332
    %v349 = vsel %vm109, %v301, %v333
    %v350 = vsel %vm110, %v302, %v334
    %v351 = vsel %vm111, %v303, %v335
    %v352 = vsel %vm112, %v304, %v336
    %v353 = vsel %vm113, %v305, %v337
    %v354 = vsel %vm114, %v306, %v338
    %v355 = vsel %vm115, %v307, %v339
    %v356 = vsel %vm116, %v308, %v340
    %v357 = vsel %vm117, %v309, %v341
    %v358 = vsel %vm118, %v310, %v342
    %v359 = vsel %vm119, %v311, %v343
    %v360 = vsel %vm120, %v312, %v344
    %v361 = vsel %vm121, %v313, %v345
    %v362 = vmul.f32 %v267, %v346
    %v363 = vmul.f32 %v269, %v347
    %v364 = vmul.f32 %v271, %v348
    %v365 = vmul.f32 %v273, %v349
    %v366 = vmul.f32 %v275, %v350
    %v367 = vmul.f32 %v277, %v351
    %v368 = vmul.f32 %v279, %v352
    %v369 = vmul.f32 %v281, %v353
    %v370 = vmul.f32 %v283, %v354
    %v371 = vmul.f32 %v285, %v355
    %v372 = vmul.f32 %v287, %v356
    %v373 = vmul.f32 %v289, %v357
    %v374 = vmul.f32 %v291, %v358
    %v375 = vmul.f32 %v293, %v359
    %v376 = vmul.f32 %v295, %v360
    %v377 = vmul.f32 %v297, %v361
    %s378 = sadd.s32 0, 0
    %p379 = scmp.lt.s32.totalorder %s378, 0
    // Predicated region
    $region22: #{tpu_custom_call.1} parent=1 // pred_check
      %p380 = pneg %p379
    $region23: #{tpu_custom_call.1} parent=1 // pred_check_branch
      %382 = sbr.rel (%p380) target = $region25
    $region24: #{tpu_custom_call.1} parent=1 // pred_region
      %v383 = vld [vmem:[#allocation7] sm:$0xff]
      %v384 = vld [vmem:[#allocation7 + $0x8] sm:$0xff]
      %v385 = vld [vmem:[#allocation7 + $0x10] sm:$0xff]
      %v386 = vld [vmem:[#allocation7 + $0x18] sm:$0xff]
      %v387 = vadd.f32 %v362, %v366
      %v388 = vadd.f32 %v387, %v370
      %v389 = vadd.f32 %v388, %v374
      %v390 = vadd.f32 %v363, %v367
      %v391 = vadd.f32 %v390, %v371
      %v392 = vadd.f32 %v391, %v375
      %v393 = vadd.f32 %v364, %v368
      %v394 = vadd.f32 %v393, %v372
      %v395 = vadd.f32 %v394, %v376
      %v396 = vadd.f32 %v365, %v369
      %v397 = vadd.f32 %v396, %v373
      %v398 = vadd.f32 %v397, %v377
      %v399 = vadd.f32 %v383, %v389
      %v400 = vadd.f32 %v384, %v392
      %v401 = vadd.f32 %v385, %v395
      %v402 = vadd.f32 %v386, %v398
      %403 = vst [vmem:[#allocation7] sm:$0xff] %v399
      %404 = vst [vmem:[#allocation7 + $0x8] sm:$0xff] %v400
      %405 = vst [vmem:[#allocation7 + $0x10] sm:$0xff] %v401
      %406 = vst [vmem:[#allocation7 + $0x18] sm:$0xff] %v402
    $region25: #{tpu_custom_call.1} parent=1 // pred_fallthru
      _
    %p407 = scmp.ge.s32.totalorder %s378, 0
    // Predicated region
    $region26: #{tpu_custom_call.1} parent=1 // pred_check
      %p408 = pneg %p407
    $region27: #{tpu_custom_call.1} parent=1 // pred_check_branch
      %410 = sbr.rel (%p408) target = $region29
    $region28: #{tpu_custom_call.1} parent=1 // pred_region
      %s411 = smul.u32 %s378, 32
      %v412 = vlaneseq
      %v413 = vshrl.u32 %v412, 7
      %v414 = vadd.s32 %v413, 8
      %v415 = vadd.s32 %v413, 16
      %v416 = vadd.s32 %v413, 24
      %v417 = vstv %s411
      %v418 = vadd.s32 %v417, %v413
      %v419 = vadd.s32 %v417, %v414
      %v420 = vadd.s32 %v417, %v415
      %v421 = vadd.s32 %v417, %v416
      %v422 = vlaneseq
      %v423 = vand.u32 %v422, 127
      %v424 = vadd.s32 %v423, 128
      %v425 = vadd.s32 %v423, 256
      %v426 = vadd.s32 %v423, 384
      %vm427 = vcmp.lt.s32.totalorder %v418, 0
      %vm428 = vcmp.lt.s32.totalorder %v419, 0
      %vm429 = vcmp.lt.s32.totalorder %v420, 0
      %vm430 = vcmp.lt.s32.totalorder %v421, 0
      %vm431 = vcmp.eq.s32.totalorder %v418, 0
      %vm432 = vcmp.eq.s32.totalorder %v419, 0
      %vm433 = vcmp.eq.s32.totalorder %v420, 0
      %vm434 = vcmp.eq.s32.totalorder %v421, 0
      %vm435 = vcmp.lt.s32.totalorder %v423, 96
      %vm436 = vcmp.lt.s32.totalorder %v424, 96
      %vm437 = vcmp.lt.s32.totalorder %v425, 96
      %vm438 = vcmp.lt.s32.totalorder %v426, 96
      %v439 = vsel %vm431, 1, 0
      %v440 = vsel %vm432, 1, 0
      %v441 = vsel %vm433, 1, 0
      %v442 = vsel %vm434, 1, 0
      %vm443 = vcmp.eq.s32.totalorder %v439, 1
      %vm444 = vcmp.eq.s32.totalorder %v440, 1
      %vm445 = vcmp.eq.s32.totalorder %v441, 1
      %vm446 = vcmp.eq.s32.totalorder %v442, 1
      %v447 = vsel %vm435, 1, 0
      %v448 = vsel %vm436, 1, 0
      %v449 = vsel %vm437, 1, 0
      %v450 = vsel %vm438, 1, 0
      %vm451 = vcmp.eq.s32.totalorder %v447, 1
      %vm452 = vcmp.eq.s32.totalorder %v448, 1
      %vm453 = vcmp.eq.s32.totalorder %v449, 1
      %vm454 = vcmp.eq.s32.totalorder %v450, 1
      %vm455 = vmand %vm443, %vm451
      %vm456 = vmand %vm443, %vm452
      %vm457 = vmand %vm443, %vm453
      %vm458 = vmand %vm443, %vm454
      %vm459 = vmand %vm444, %vm451
      %vm460 = vmand %vm444, %vm452
      %vm461 = vmand %vm444, %vm453
      %vm462 = vmand %vm444, %vm454
      %vm463 = vmand %vm445, %vm451
      %vm464 = vmand %vm445, %vm452
      %vm465 = vmand %vm445, %vm453
      %vm466 = vmand %vm445, %vm454
      %vm467 = vmand %vm446, %vm451
      %vm468 = vmand %vm446, %vm452
      %vm469 = vmand %vm446, %vm453
      %vm470 = vmand %vm446, %vm454
      %v471 = vsel %vm427, 1, 0
      %v472 = vsel %vm428, 1, 0
      %v473 = vsel %vm429, 1, 0
      %v474 = vsel %vm430, 1, 0
      %vm475 = vcmp.eq.s32.totalorder %v471, 1
      %vm476 = vcmp.eq.s32.totalorder %v472, 1
      %vm477 = vcmp.eq.s32.totalorder %v473, 1
      %vm478 = vcmp.eq.s32.totalorder %v474, 1
      %vm479 = vmor %vm475, %vm455
      %vm480 = vmor %vm475, %vm456
      %vm481 = vmor %vm475, %vm457
      %vm482 = vmor %vm475, %vm458
      %vm483 = vmor %vm476, %vm459
      %vm484 = vmor %vm476, %vm460
      %vm485 = vmor %vm476, %vm461
      %vm486 = vmor %vm476, %vm462
      %vm487 = vmor %vm477, %vm463
      %vm488 = vmor %vm477, %vm464
      %vm489 = vmor %vm477, %vm465
      %vm490 = vmor %vm477, %vm466
      %vm491 = vmor %vm478, %vm467
      %vm492 = vmor %vm478, %vm468
      %vm493 = vmor %vm478, %vm469
      %vm494 = vmor %vm478, %vm470
      %v495 = vsel %vm479, %v362, 0.0
      %v496 = vsel %vm480, %v363, 0.0
      %v497 = vsel %vm481, %v364, 0.0
      %v498 = vsel %vm482, %v365, 0.0
      %v499 = vsel %vm483, %v366, 0.0
      %v500 = vsel %vm484, %v367, 0.0
      %v501 = vsel %vm485, %v368, 0.0
      %v502 = vsel %vm486, %v369, 0.0
      %v503 = vsel %vm487, %v370, 0.0
      %v504 = vsel %vm488, %v371, 0.0
      %v505 = vsel %vm489, %v372, 0.0
      %v506 = vsel %vm490, %v373, 0.0
      %v507 = vsel %vm491, %v374, 0.0
      %v508 = vsel %vm492, %v375, 0.0
      %v509 = vsel %vm493, %v376, 0.0
      %v510 = vsel %vm494, %v377, 0.0
      %v511 = vld [vmem:[#allocation7] sm:$0xff]
      %v512 = vld [vmem:[#allocation7 + $0x8] sm:$0xff]
      %v513 = vld [vmem:[#allocation7 + $0x10] sm:$0xff]
      %v514 = vld [vmem:[#allocation7 + $0x18] sm:$0xff]
      %v515 = vadd.f32 %v495, %v499
      %v516 = vadd.f32 %v515, %v503
      %v517 = vadd.f32 %v516, %v507
      %v518 = vadd.f32 %v496, %v500
      %v519 = vadd.f32 %v518, %v504
      %v520 = vadd.f32 %v519, %v508
      %v521 = vadd.f32 %v497, %v501
      %v522 = vadd.f32 %v521, %v505
      %v523 = vadd.f32 %v522, %v509
      %v524 = vadd.f32 %v498, %v502
      %v525 = vadd.f32 %v524, %v506
      %v526 = vadd.f32 %v525, %v510
      %v527 = vadd.f32 %v511, %v517
      %v528 = vadd.f32 %v512, %v520
      %v529 = vadd.f32 %v513, %v523
      %v530 = vadd.f32 %v514, %v526
      %531 = vst [vmem:[#allocation7] sm:$0xff] %v527
      %532 = vst [vmem:[#allocation7 + $0x8] sm:$0xff] %v528
      %533 = vst [vmem:[#allocation7 + $0x10] sm:$0xff] %v529
      %534 = vst [vmem:[#allocation7 + $0x18] sm:$0xff] %v530
    $region29: #{tpu_custom_call.1} parent=1 // pred_fallthru
      _
    // Predicated region
    $region30: #{tpu_custom_call.1} parent=1 // pred_check
      _
    $region31: #{tpu_custom_call.1} parent=1 // pred_check_branch
      %536 = sbr.rel (0) target = $region33
    $region32: #{tpu_custom_call.1} parent=1 // pred_region
      %538 = vsyncadd [#allocation4], 0
      %s540 = sshll.u32 [#allocation7], 4
      %s541 = int_to_ptr.vmem [resolvable:$true] %s540
      %s542 = sshll.u32 %s2, 4
      %s543 = int_to_ptr.hbm [resolvable:$true] %s542
      %545 = dma.vmem_to_hbm [thread:$0]  %s541, 512, %s543, [#allocation4]
    $region33: #{tpu_custom_call.1} parent=1 // pred_fallthru
      _
    // Predicated region
    $region34: #{tpu_custom_call.1} parent=1 // pred_check
      _
    $region35: #{tpu_custom_call.1} parent=1 // pred_check_branch
      %547 = sbr.rel (0) target = $region37
    $region36: #{tpu_custom_call.1} parent=1 // pred_region
      %549 = dma.done [#allocation4], 512
    $region37: #{tpu_custom_call.1} parent=1 // pred_fallthru
      _
    %550 = vsyncpa [#allocation3], 1
    %551 = vsyncpa [#allocation6], 1
    %552 = vsyncpa [#allocation4], 1

</llo_original>
